<compile_context>
chip_gen: v7x
topology: tpu7x:2x2x1
jax: 0.10.0
libtpu: 0.0.40
codegen_flags: <defaults>
</compile_context>

<pallas_src>
import functools

import jax
import jax.numpy as jnp
from jax.experimental import pallas as pl
from jax.experimental.pallas import tpu as pltpu

HIDDEN = 256
LANE = 128
SUBLANE = 8
SINGLE_STEP_ROWS = 512   # batches up to this many rows run as one grid step
MAX_BATCH_TILE = 1024    # rows per grid step for large rollout batches


def _round_up(x, m):
    return (x + m - 1) // m * m


def _agent_kernel(x_ref, w1_ref, b1_ref, wpv_ref, bpv_ref, out_ref, *,
                  input_dims, action_dims):
    x = x_ref[...]            # (BT, input_dims)  -- unpadded lanes
    w1 = w1_ref[...]          # (input_dims, H)

    # fc1 + relu as an unrolled broadcast-FMA on the VPU (K = input_dims is
    # far too small to be worth the MXU); bias seeds the accumulator.
    h = b1_ref[...]                                           # (1, H)
    for k in range(input_dims):                               # static unroll
        h = h + x[:, k:k + 1] * w1[k:k + 1, :]                # (BT, H)
    h = jnp.maximum(h, 0.0)

    # Fused policy+value head: one MXU matmul. Value weight lives in column
    # `action_dims` of wpv; remaining padded columns are zero.
    logits = jnp.dot(h, wpv_ref[...], preferred_element_type=jnp.float32)
    logits = logits + bpv_ref[...]                            # (BT, Ap)

    # Masked softmax over the policy columns only (exact normalization).
    col = jax.lax.broadcasted_iota(jnp.int32, logits.shape, 1)
    is_policy = col < action_dims
    masked = jnp.where(is_policy, logits, -1e30)
    m = jnp.max(masked, axis=-1, keepdims=True)
    e = jnp.exp(masked - m)              # non-policy cols underflow to 0
    denom = jnp.sum(e, axis=-1, keepdims=True)
    soft = e / denom

    # Cols [0, action_dims) -> softmax policy; col action_dims -> raw value.
    result = jnp.where(is_policy, soft, logits)
    out_ref[...] = result[:, :action_dims + 1]                # narrow store


def prepare_params(params, *, input_dims=4, action_dims=2, hidden=HIDDEN):
    """One-time packing of parameters into TPU-friendly layouts.

    Weights are stored transposed ([in_features, out_features]) relative to
    PyTorch nn.Linear ([out, in]); the value head is packed into column
    `action_dims` of the policy weight/bias so the kernel needs a single
    head matmul. w1 is kept unpadded (the kernel does not route it through
    the MXU).
    """
    Ap = _round_up(action_dims + 1, LANE)

    w1 = params["w1"].astype(jnp.float32)                     # (input_dims, H)
    b1 = params["b1"].reshape(1, hidden).astype(jnp.float32)

    wpv = jnp.zeros((hidden, Ap), jnp.float32)
    wpv = wpv.at[:, :action_dims].set(params["wp"].astype(jnp.float32))
    wpv = wpv.at[:, action_dims:action_dims + 1].set(
        params["wv"].astype(jnp.float32))

    bpv = jnp.zeros((1, Ap), jnp.float32)
    bpv = bpv.at[:, :action_dims].set(
        params["bp"].reshape(1, -1).astype(jnp.float32))
    bpv = bpv.at[:, action_dims:action_dims + 1].set(
        params["bv"].reshape(1, -1).astype(jnp.float32))

    return {"w1": w1, "b1": b1, "wpv": wpv, "bpv": bpv}


@functools.partial(jax.jit, static_argnames=("input_dims", "action_dims",
                                             "hidden"))
def agent_forward(x, padded_params, *, input_dims=4, action_dims=2,
                  hidden=HIDDEN):
    """x: [B, input_dims] float32; padded_params from prepare_params().
    Returns (softmax_policy [B, action_dims], value [B, 1])."""
    B = x.shape[0]
    Ap = padded_params["wpv"].shape[1]
    Aout = action_dims + 1

    # Batch tiling: one grid step for small/medium batches; for large batches
    # cap the tile and emit >= 2 tiles so the parallel axis spans both
    # TensorCores on v7x (no effect on single-TC v5e/v6e).
    Bq = _round_up(max(B, 1), SUBLANE)
    if Bq <= SINGLE_STEP_ROWS:
        BT = Bq
    else:
        BT = min(MAX_BATCH_TILE, _round_up(pl.cdiv(Bq, 2), SUBLANE))
    Bp = _round_up(Bq, BT)
    n_tiles = Bp // BT

    # Only batch-dimension padding of x (no lane padding, no weight padding).
    x = x.astype(jnp.float32)
    if Bp != B:
        x_p = jnp.zeros((Bp, input_dims), jnp.float32).at[:B, :].set(x)
    else:
        x_p = x

    kernel = functools.partial(_agent_kernel, input_dims=input_dims,
                               action_dims=action_dims)

    out = pl.pallas_call(
        kernel,
        out_shape=jax.ShapeDtypeStruct((Bp, Aout), jnp.float32),
        grid_spec=pltpu.PrefetchScalarGridSpec(
            num_scalar_prefetch=0,
            grid=(n_tiles,),
            in_specs=[
                pl.BlockSpec((BT, input_dims), lambda i: (i, 0)),
                pl.BlockSpec((input_dims, hidden), lambda i: (0, 0)),
                pl.BlockSpec((1, hidden), lambda i: (0, 0)),
                pl.BlockSpec((hidden, Ap), lambda i: (0, 0)),
                pl.BlockSpec((1, Ap), lambda i: (0, 0)),
            ],
            out_specs=pl.BlockSpec((BT, Aout), lambda i: (i, 0)),
        ),
        compiler_params=pltpu.CompilerParams(
            dimension_semantics=("parallel",)),
    )(x_p, padded_params["w1"], padded_params["b1"],
      padded_params["wpv"], padded_params["bpv"])

    policy = out[:B, :action_dims]
    value = out[:B, action_dims:action_dims + 1]
    return policy, value


def init_params(key, input_dims=4, action_dims=2, hidden=HIDDEN):
    """Deterministic PyTorch-Linear-style init (uniform(-1/sqrt(fan_in), ..)).
    Weights stored transposed: [in_features, out_features]."""
    ks = jax.random.split(key, 6)

    def lin(kw, kb, fan_in, fan_out):
        bound = 1.0 / jnp.sqrt(jnp.float32(fan_in))
        w = jax.random.uniform(kw, (fan_in, fan_out), jnp.float32,
                               -bound, bound)
        b = jax.random.uniform(kb, (fan_out,), jnp.float32, -bound, bound)
        return w, b

    w1, b1 = lin(ks[0], ks[1], input_dims, hidden)
    wp, bp = lin(ks[2], ks[3], hidden, action_dims)
    wv, bv = lin(ks[4], ks[5], hidden, 1)
    return {"w1": w1, "b1": b1, "wp": wp, "bp": bp, "wv": wv, "bv": bv}


if __name__ == "__main__":
    key = jax.random.PRNGKey(0)
    k_param, k_x = jax.random.split(key)

    input_dims, action_dims, hidden = 4, 2, 256
    batch = 2

    params = init_params(k_param, input_dims, action_dims, hidden)
    padded = prepare_params(params, input_dims=input_dims,
                            action_dims=action_dims, hidden=hidden)
    x = jax.random.normal(k_x, (batch, input_dims), jnp.float32)

    policy, value = agent_forward(x, padded, input_dims=input_dims,
                                  action_dims=action_dims, hidden=hidden)
    jax.block_until_ready((policy, value))

    # Pure-JAX reference check.
    h_ref = jnp.maximum(x @ params["w1"] + params["b1"], 0.0)
    pol_ref = jax.nn.softmax(h_ref @ params["wp"] + params["bp"], axis=1)
    val_ref = h_ref @ params["wv"] + params["bv"]
    assert jnp.allclose(policy, pol_ref, atol=1e-4, rtol=1e-4), "policy mismatch"
    assert jnp.allclose(value, val_ref, atol=1e-4, rtol=1e-4), "value mismatch"
    assert policy.shape == (batch, action_dims)
    assert value.shape == (batch, 1)

    # TODO(synk): select_action's multinomial sampling / saved_actions are
    # host-side training bookkeeping, not part of the forward pass kernel.

    print("KERNEL_OK")
</pallas_src>

<mosaic_0001>
module attributes {stable_mosaic.version = 11 : i64} {
  func.func @_agent_kernel(%arg0: i32, %arg1: memref<8x4xf32, #tpu.memory_space<vmem>>, %arg2: memref<4x256xf32, #tpu.memory_space<vmem>>, %arg3: memref<1x256xf32, #tpu.memory_space<vmem>>, %arg4: memref<256x128xf32, #tpu.memory_space<vmem>>, %arg5: memref<1x128xf32, #tpu.memory_space<vmem>>, %arg6: memref<8x3xf32, #tpu.memory_space<vmem>>) attributes {dimension_semantics = [#tpu.dimension_semantics<parallel>], iteration_bounds = array<i64: 1>, scalar_prefetch = 0 : i64, scratch_operands = 0 : i64, tpu.core_type = #tpu.core_type<tc>, window_params = [{transform_indices = @transform_0, window_bounds = array<i64: 8, 4>}, {pipeline_mode = #tpu.pipeline_mode<synchronous>, transform_indices = @transform_1, window_bounds = array<i64: 4, 256>}, {pipeline_mode = #tpu.pipeline_mode<synchronous>, transform_indices = @transform_2, window_bounds = array<i64: 1, 256>}, {pipeline_mode = #tpu.pipeline_mode<synchronous>, transform_indices = @transform_3, window_bounds = array<i64: 256, 128>}, {pipeline_mode = #tpu.pipeline_mode<synchronous>, transform_indices = @transform_4, window_bounds = array<i64: 1, 128>}, {transform_indices = @transform_5, window_bounds = array<i64: 8, 3>}]} {
    %c0 = arith.constant 0 : index
    %c0_0 = arith.constant 0 : index
    %0 = vector.load %arg1[%c0, %c0_0] : memref<8x4xf32, #tpu.memory_space<vmem>>, vector<8x4xf32>
    %c0_1 = arith.constant 0 : index
    %c0_2 = arith.constant 0 : index
    %1 = vector.load %arg2[%c0_1, %c0_2] : memref<4x256xf32, #tpu.memory_space<vmem>>, vector<4x256xf32>
    %c0_3 = arith.constant 0 : index
    %c0_4 = arith.constant 0 : index
    %2 = vector.load %arg3[%c0_3, %c0_4] : memref<1x256xf32, #tpu.memory_space<vmem>>, vector<1x256xf32>
    %3 = vector.extract_strided_slice %0 {offsets = [0, 0], sizes = [8, 1], strides = [1, 1]} : vector<8x4xf32> to vector<8x1xf32>
    %4 = vector.extract_strided_slice %1 {offsets = [0, 0], sizes = [1, 256], strides = [1, 1]} : vector<4x256xf32> to vector<1x256xf32>
    %5 = vector.broadcast %3 : vector<8x1xf32> to vector<8x256xf32>
    %6 = vector.broadcast %4 : vector<1x256xf32> to vector<8x256xf32>
    %7 = arith.mulf %5, %6 : vector<8x256xf32>
    %8 = vector.broadcast %2 : vector<1x256xf32> to vector<8x256xf32>
    %9 = arith.addf %8, %7 : vector<8x256xf32>
    %10 = vector.extract_strided_slice %0 {offsets = [0, 1], sizes = [8, 1], strides = [1, 1]} : vector<8x4xf32> to vector<8x1xf32>
    %11 = vector.extract_strided_slice %1 {offsets = [1, 0], sizes = [1, 256], strides = [1, 1]} : vector<4x256xf32> to vector<1x256xf32>
    %12 = vector.broadcast %10 : vector<8x1xf32> to vector<8x256xf32>
    %13 = vector.broadcast %11 : vector<1x256xf32> to vector<8x256xf32>
    %14 = arith.mulf %12, %13 : vector<8x256xf32>
    %15 = arith.addf %9, %14 : vector<8x256xf32>
    %16 = vector.extract_strided_slice %0 {offsets = [0, 2], sizes = [8, 1], strides = [1, 1]} : vector<8x4xf32> to vector<8x1xf32>
    %17 = vector.extract_strided_slice %1 {offsets = [2, 0], sizes = [1, 256], strides = [1, 1]} : vector<4x256xf32> to vector<1x256xf32>
    %18 = vector.broadcast %16 : vector<8x1xf32> to vector<8x256xf32>
    %19 = vector.broadcast %17 : vector<1x256xf32> to vector<8x256xf32>
    %20 = arith.mulf %18, %19 : vector<8x256xf32>
    %21 = arith.addf %15, %20 : vector<8x256xf32>
    %22 = vector.extract_strided_slice %0 {offsets = [0, 3], sizes = [8, 1], strides = [1, 1]} : vector<8x4xf32> to vector<8x1xf32>
    %23 = vector.extract_strided_slice %1 {offsets = [3, 0], sizes = [1, 256], strides = [1, 1]} : vector<4x256xf32> to vector<1x256xf32>
    %24 = vector.broadcast %22 : vector<8x1xf32> to vector<8x256xf32>
    %25 = vector.broadcast %23 : vector<1x256xf32> to vector<8x256xf32>
    %26 = arith.mulf %24, %25 : vector<8x256xf32>
    %27 = arith.addf %21, %26 : vector<8x256xf32>
    %cst = arith.constant 0.000000e+00 : f32
    %28 = vector.broadcast %cst : f32 to vector<8x256xf32>
    %29 = arith.maximumf %27, %28 : vector<8x256xf32>
    %c0_5 = arith.constant 0 : index
    %c0_6 = arith.constant 0 : index
    %30 = vector.load %arg4[%c0_5, %c0_6] : memref<256x128xf32, #tpu.memory_space<vmem>>, vector<256x128xf32>
    %cst_7 = arith.constant dense<0.000000e+00> : vector<8x128xf32>
    %31 = tpu.matmul %29, %30, %cst_7 {dimension_numbers = #tpu.dot_dimension_numbers<[1], [0], [0], [1], [0, 0, 1, 1], [], []>} : vector<8x256xf32>, vector<256x128xf32>, vector<8x128xf32> -> vector<8x128xf32>
    %c0_8 = arith.constant 0 : index
    %c0_9 = arith.constant 0 : index
    %32 = vector.load %arg5[%c0_8, %c0_9] : memref<1x128xf32, #tpu.memory_space<vmem>>, vector<1x128xf32>
    %33 = vector.broadcast %32 : vector<1x128xf32> to vector<8x128xf32>
    %34 = arith.addf %31, %33 : vector<8x128xf32>
    %35 = tpu.iota {dimensions = array<i32: 1>} : vector<8x128xi32>
    %c2_i32 = arith.constant 2 : i32
    %36 = vector.broadcast %c2_i32 : i32 to vector<8x128xi32>
    %37 = arith.cmpi slt, %35, %36 : vector<8x128xi32>
    %cst_10 = arith.constant -1.000000e+30 : f32
    %38 = vector.broadcast %cst_10 : f32 to vector<8x128xf32>
    %39 = arith.select %37, %34, %38 : vector<8x128xi1>, vector<8x128xf32>
    %cst_11 = arith.constant dense<0xFF800000> : vector<8xf32>
    %40 = vector.multi_reduction <maximumf>, %39, %cst_11 [1] : vector<8x128xf32> to vector<8xf32>
    %41 = vector.shape_cast %40 : vector<8xf32> to vector<8x1xf32>
    %42 = vector.broadcast %41 : vector<8x1xf32> to vector<8x128xf32>
    %43 = arith.subf %39, %42 : vector<8x128xf32>
    %44 = math.exp %43 : vector<8x128xf32>
    %cst_12 = arith.constant dense<0.000000e+00> : vector<8xf32>
    %45 = vector.multi_reduction <add>, %44, %cst_12 [1] : vector<8x128xf32> to vector<8xf32>
    %46 = vector.shape_cast %45 : vector<8xf32> to vector<8x1xf32>
    %47 = vector.broadcast %46 : vector<8x1xf32> to vector<8x128xf32>
    %48 = arith.divf %44, %47 : vector<8x128xf32>
    %49 = arith.select %37, %48, %34 : vector<8x128xi1>, vector<8x128xf32>
    %50 = vector.extract_strided_slice %49 {offsets = [0, 0], sizes = [8, 3], strides = [1, 1]} : vector<8x128xf32> to vector<8x3xf32>
    %c0_13 = arith.constant 0 : index
    %c0_14 = arith.constant 0 : index
    %51 = vector.load %arg6[%c0_13, %c0_14] : memref<8x3xf32, #tpu.memory_space<vmem>>, vector<8x3xf32>
    tpu.vector_store %arg6[%c0_13, %c0_14], %50 {strides = array<i32>} : memref<8x3xf32, #tpu.memory_space<vmem>>, vector<8x3xf32>,
    return
  }
  func.func @transform_0(%arg0: i32) -> (i32, i32) {
    %c0_i32 = arith.constant 0 : i32
    %c0_i32_0 = arith.constant 0 : i32
    return %arg0, %c0_i32 : i32, i32
  }
  func.func @transform_1(%arg0: i32) -> (i32, i32) {
    %c0_i32 = arith.constant 0 : i32
    %c0_i32_0 = arith.constant 0 : i32
    %c0_i32_1 = arith.constant 0 : i32
    return %c0_i32, %c0_i32_0 : i32, i32
  }
  func.func @transform_2(%arg0: i32) -> (i32, i32) {
    %c0_i32 = arith.constant 0 : i32
    %c0_i32_0 = arith.constant 0 : i32
    %c0_i32_1 = arith.constant 0 : i32
    return %c0_i32, %c0_i32_0 : i32, i32
  }
  func.func @transform_3(%arg0: i32) -> (i32, i32) {
    %c0_i32 = arith.constant 0 : i32
    %c0_i32_0 = arith.constant 0 : i32
    %c0_i32_1 = arith.constant 0 : i32
    return %c0_i32, %c0_i32_0 : i32, i32
  }
  func.func @transform_4(%arg0: i32) -> (i32, i32) {
    %c0_i32 = arith.constant 0 : i32
    %c0_i32_0 = arith.constant 0 : i32
    %c0_i32_1 = arith.constant 0 : i32
    return %c0_i32, %c0_i32_0 : i32, i32
  }
  func.func @transform_5(%arg0: i32) -> (i32, i32) {
    %c0_i32 = arith.constant 0 : i32
    %c0_i32_0 = arith.constant 0 : i32
    return %arg0, %c0_i32 : i32, i32
  }
}

</mosaic_0001>

<llo_original>
// kernel: agent_forward.1
$region0: #{agent_forward.1}
  #allocation0 [shape = 'u32[]', space=smem, size = 0x4, offset = 0x4, fixed_abs, tag = 'smem constant byte address 0x4 - core index']
  #allocation1 [shape = 'u32[144,128]{1,0:T(1,128)}', space=vmem, size = 0x12000, scoped, tag = 'internal scratch']
  %s0 = inlined_call_operand.vmem [shape: f32[8,4], index: 0, kind: input, shape index: {}]
  %s1 = inlined_call_operand.vmem [shape: f32[4,256], index: 1, kind: input, shape index: {}]
  %s2 = inlined_call_operand.vmem [shape: f32[1,256], index: 2, kind: input, shape index: {}]
  %s3 = inlined_call_operand.hbm [shape: f32[256,128], index: 3, kind: input, shape index: {}]
  %s4 = inlined_call_operand.vmem [shape: f32[1,128], index: 4, kind: input, shape index: {}]
  %s5 = inlined_call_operand.vmem [shape: f32[8,3], index: 5, kind: output, shape index: {}]
  %s6 = sld [smem:[#allocation0]]
  $region34: #{agent_forward.1} parent=0
    _
  %s8 = ssub.s32 1, %s6
  %s9 = scalar_select 0, %s8, %s6
  $region1: #{agent_forward.1} parent=0
    #allocation2 [shape = 'u8[131072]{0}', space=vmem, size = 0x20000, scoped, tag = 'input window, operand 3, single buffered']
    #allocation3 [shape = 's32[1]{0}', space=sflag, size = 0x4, scoped, tag = 'scoped memory for agent_forward.1']
    %10 = vsyncpa [#allocation3], 0
    // Predicated region
    $region2: #{agent_forward.1} parent=1 // pred_check
      _
    $region3: #{agent_forward.1} parent=1 // pred_check_branch
      %12 = sbr.rel (0) target = $region5
    $region4: #{agent_forward.1} parent=1 // pred_region
      _
    $region5: #{agent_forward.1} parent=1 // pred_fallthru
      _
    // Predicated region
    $region6: #{agent_forward.1} parent=1 // pred_check
      _
    $region7: #{agent_forward.1} parent=1 // pred_check_branch
      %14 = sbr.rel (0) target = $region9
    $region8: #{agent_forward.1} parent=1 // pred_region
      _
    $region9: #{agent_forward.1} parent=1 // pred_fallthru
      _
    // Predicated region
    $region10: #{agent_forward.1} parent=1 // pred_check
      _
    $region11: #{agent_forward.1} parent=1 // pred_check_branch
      %16 = sbr.rel (0) target = $region13
    $region12: #{agent_forward.1} parent=1 // pred_region
      _
    $region13: #{agent_forward.1} parent=1 // pred_fallthru
      _
    // Predicated region
    $region14: #{agent_forward.1} parent=1 // pred_check
      _
    $region15: #{agent_forward.1} parent=1 // pred_check_branch
      %18 = sbr.rel (0) target = $region17
    $region16: #{agent_forward.1} parent=1 // pred_region
      %s20 = ssub.s32 4096, 4096
      %21 = vsyncadd [#allocation3], %s20
      %s22 = sshll.u32 [#allocation2], 4
      %s23 = int_to_ptr.vmem [resolvable:$true] %s22
      %28 = dma.hbm_to_vmem [thread:$0]  %s3, 4096, %s23, [#allocation3], 128, 128, 8
    $region17: #{agent_forward.1} parent=1 // pred_fallthru
      _
    // Predicated region
    $region18: #{agent_forward.1} parent=1 // pred_check
      _
    $region19: #{agent_forward.1} parent=1 // pred_check_branch
      %30 = sbr.rel (0) target = $region21
    $region20: #{agent_forward.1} parent=1 // pred_region
      _
    $region21: #{agent_forward.1} parent=1 // pred_fallthru
      _
    // Predicated region
    $region22: #{agent_forward.1} parent=1 // pred_check
      _
    $region23: #{agent_forward.1} parent=1 // pred_check_branch
      %32 = sbr.rel (0) target = $region25
    $region24: #{agent_forward.1} parent=1 // pred_region
      %33 = dma.done [#allocation3], 4096
    $region25: #{agent_forward.1} parent=1 // pred_fallthru
      _
    %v34 = vld [vmem:[%s0] sm:$0xff]
    %v35 = vld [vmem:[%s1] sm:$0xff]
    %v36 = vld [vmem:[%s2] sm:$0x3]
    %38 = vset.pattern.permute.xlu0 0
    %39 = vperm.xlu0 %38, %v34
    %v40 = vpop.permute.xlu0 %39
    %v43 = vlaneseq
    %v44 = vshrl.u32 %v43, 7
    %v45 = vsub.s32 0, %v44
    %v46 = vrot.slane %v35, %v45
    %v47 = vlaneseq
    %v48 = vshrl.u32 %v47, 7
    %v49 = vsub.s32 4, %v48
    %v50 = vrot.slane %v35, %v49
    %v53 = vlaneseq
    %v54 = vshrl.u32 %v53, 7
    %v55 = vsub.s32 0, %v54
    %v56 = vrot.slane %v46, %v55
    %v57 = vlaneseq
    %v58 = vshrl.u32 %v57, 7
    %v59 = vsub.s32 0, %v58
    %v60 = vrot.slane %v50, %v59
    %v61 = vmul.f32 %v40, %v56
    %v62 = vmul.f32 %v40, %v60
    %v64 = vlaneseq
    %v65 = vshrl.u32 %v64, 7
    %v66 = vsub.s32 0, %v65
    %v67 = vrot.slane %v36, %v66
    %v68 = vlaneseq
    %v69 = vshrl.u32 %v68, 7
    %v70 = vsub.s32 1, %v69
    %v71 = vrot.slane %v36, %v70
    %v74 = vadd.f32 %v67, %v61
    %v75 = vadd.f32 %v71, %v62
    %76 = vset.pattern.permute.xlu0 1
    %77 = vperm.xlu0 %76, %v34
    %v78 = vpop.permute.xlu0 %77
    %v80 = vlaneseq
    %v81 = vshrl.u32 %v80, 7
    %v82 = vsub.s32 1, %v81
    %v83 = vrot.slane %v35, %v82
    %v84 = vlaneseq
    %v85 = vshrl.u32 %v84, 7
    %v86 = vsub.s32 5, %v85
    %v87 = vrot.slane %v35, %v86
    %v90 = vlaneseq
    %v91 = vshrl.u32 %v90, 7
    %v92 = vsub.s32 1, %v91
    %v93 = vrot.slane %v83, %v92
    %v94 = vlaneseq
    %v95 = vshrl.u32 %v94, 7
    %v96 = vsub.s32 1, %v95
    %v97 = vrot.slane %v87, %v96
    %v98 = vmul.f32 %v78, %v93
    %v99 = vmul.f32 %v78, %v97
    %v100 = vadd.f32 %v74, %v98
    %v101 = vadd.f32 %v75, %v99
    %102 = vset.pattern.permute.xlu0 2
    %103 = vperm.xlu0 %102, %v34
    %v104 = vpop.permute.xlu0 %103
    %v106 = vlaneseq
    %v107 = vshrl.u32 %v106, 7
    %v108 = vsub.s32 2, %v107
    %v109 = vrot.slane %v35, %v108
    %v110 = vlaneseq
    %v111 = vshrl.u32 %v110, 7
    %v112 = vsub.s32 6, %v111
    %v113 = vrot.slane %v35, %v112
    %v116 = vlaneseq
    %v117 = vshrl.u32 %v116, 7
    %v118 = vsub.s32 2, %v117
    %v119 = vrot.slane %v109, %v118
    %v120 = vlaneseq
    %v121 = vshrl.u32 %v120, 7
    %v122 = vsub.s32 2, %v121
    %v123 = vrot.slane %v113, %v122
    %v124 = vmul.f32 %v104, %v119
    %v125 = vmul.f32 %v104, %v123
    %v126 = vadd.f32 %v100, %v124
    %v127 = vadd.f32 %v101, %v125
    %128 = vset.pattern.permute.xlu0 3
    %129 = vperm.xlu0 %128, %v34
    %v130 = vpop.permute.xlu0 %129
    %v132 = vlaneseq
    %v133 = vshrl.u32 %v132, 7
    %v134 = vsub.s32 3, %v133
    %v135 = vrot.slane %v35, %v134
    %v136 = vlaneseq
    %v137 = vshrl.u32 %v136, 7
    %v138 = vsub.s32 7, %v137
    %v139 = vrot.slane %v35, %v138
    %v142 = vlaneseq
    %v143 = vshrl.u32 %v142, 7
    %v144 = vsub.s32 3, %v143
    %v145 = vrot.slane %v135, %v144
    %v146 = vlaneseq
    %v147 = vshrl.u32 %v146, 7
    %v148 = vsub.s32 3, %v147
    %v149 = vrot.slane %v139, %v148
    %v150 = vmul.f32 %v130, %v145
    %v151 = vmul.f32 %v130, %v149
    %v152 = vadd.f32 %v126, %v150
    %v153 = vadd.f32 %v127, %v151
    %v154 = vmax.f32 %v152, 0.0
    %v155 = vmax.f32 %v153, 0.0
    %v156 = vld [vmem:[#allocation2] sm:$0xff]
    %v157 = vld [vmem:[#allocation2 + $0x8] sm:$0xff]
    %v158 = vld [vmem:[#allocation2 + $0x10] sm:$0xff]
    %v159 = vld [vmem:[#allocation2 + $0x18] sm:$0xff]
    %v160 = vld [vmem:[#allocation2 + $0x20] sm:$0xff]
    %v161 = vld [vmem:[#allocation2 + $0x28] sm:$0xff]
    %v162 = vld [vmem:[#allocation2 + $0x30] sm:$0xff]
    %v163 = vld [vmem:[#allocation2 + $0x38] sm:$0xff]
    %v164 = vld [vmem:[#allocation2 + $0x40] sm:$0xff]
    %v165 = vld [vmem:[#allocation2 + $0x48] sm:$0xff]
    %v166 = vld [vmem:[#allocation2 + $0x50] sm:$0xff]
    %v167 = vld [vmem:[#allocation2 + $0x58] sm:$0xff]
    %v168 = vld [vmem:[#allocation2 + $0x60] sm:$0xff]
    %v169 = vld [vmem:[#allocation2 + $0x68] sm:$0xff]
    %v170 = vld [vmem:[#allocation2 + $0x70] sm:$0xff]
    %v171 = vld [vmem:[#allocation2 + $0x78] sm:$0xff]
    %v172 = vld [vmem:[#allocation2 + $0x80] sm:$0xff]
    %v173 = vld [vmem:[#allocation2 + $0x88] sm:$0xff]
    %v174 = vld [vmem:[#allocation2 + $0x90] sm:$0xff]
    %v175 = vld [vmem:[#allocation2 + $0x98] sm:$0xff]
    %v176 = vld [vmem:[#allocation2 + $0xa0] sm:$0xff]
    %v177 = vld [vmem:[#allocation2 + $0xa8] sm:$0xff]
    %v178 = vld [vmem:[#allocation2 + $0xb0] sm:$0xff]
    %v179 = vld [vmem:[#allocation2 + $0xb8] sm:$0xff]
    %v180 = vld [vmem:[#allocation2 + $0xc0] sm:$0xff]
    %v181 = vld [vmem:[#allocation2 + $0xc8] sm:$0xff]
    %v182 = vld [vmem:[#allocation2 + $0xd0] sm:$0xff]
    %v183 = vld [vmem:[#allocation2 + $0xd8] sm:$0xff]
    %v184 = vld [vmem:[#allocation2 + $0xe0] sm:$0xff]
    %v185 = vld [vmem:[#allocation2 + $0xe8] sm:$0xff]
    %v186 = vld [vmem:[#allocation2 + $0xf0] sm:$0xff]
    %v187 = vld [vmem:[#allocation2 + $0xf8] sm:$0xff]
    %v188 = vld [vmem:[%s4] sm:$0x1]
    %v190 = vlaneseq
    %v191 = vshrl.u32 %v190, 7
    %v192 = vsub.s32 0, %v191
    %v193 = vrot.slane %v188, %v192
    %195 = vmatprep.subr.mxu0 0.0
    %196 = vmatpush1.msra.mxu0 %v156
    %197 = vmatprep.subr.mxu0 0.0
    %198 = vmatpush1.msra.mxu0 %v157
    %199 = vmatprep.subr.mxu0 0.0
    %200 = vmatpush1.msra.mxu0 %v158
    %201 = vmatprep.subr.mxu0 0.0
    %202 = vmatpush1.msra.mxu0 %v159
    %203 = vmatprep.subr.mxu0 0.0
    %204 = vmatpush1.msra.mxu0 %v160
    %205 = vmatprep.subr.mxu0 0.0
    %206 = vmatpush1.msra.mxu0 %v161
    %207 = vmatprep.subr.mxu0 0.0
    %208 = vmatpush1.msra.mxu0 %v162
    %209 = vmatprep.subr.mxu0 0.0
    %210 = vmatpush1.msra.mxu0 %v163
    %211 = vmatprep.subr.mxu0 0.0
    %212 = vmatpush1.msra.mxu0 %v164
    %213 = vmatprep.subr.mxu0 0.0
    %214 = vmatpush1.msra.mxu0 %v165
    %215 = vmatprep.subr.mxu0 0.0
    %216 = vmatpush1.msra.mxu0 %v166
    %217 = vmatprep.subr.mxu0 0.0
    %218 = vmatpush1.msra.mxu0 %v167
    %219 = vmatprep.subr.mxu0 0.0
    %220 = vmatpush1.msra.mxu0 %v168
    %221 = vmatprep.subr.mxu0 0.0
    %222 = vmatpush1.msra.mxu0 %v169
    %223 = vmatprep.subr.mxu0 0.0
    %224 = vmatpush1.msra.mxu0 %v170
    %225 = vmatprep.subr.mxu0 0.0
    %226 = vmatpush1.msra.mxu0 %v171
    %227 = vmatprep.subr.mxu0 0.0
    %228 = vmatpush1.msra.mxu0 %v172
    %229 = vmatprep.subr.mxu0 0.0
    %230 = vmatpush1.msra.mxu0 %v173
    %231 = vmatprep.subr.mxu0 0.0
    %232 = vmatpush1.msra.mxu0 %v174
    %233 = vmatprep.subr.mxu0 0.0
    %234 = vmatpush1.msra.mxu0 %v175
    %235 = vmatprep.subr.mxu0 0.0
    %236 = vmatpush1.msra.mxu0 %v176
    %237 = vmatprep.subr.mxu0 0.0
    %238 = vmatpush1.msra.mxu0 %v177
    %239 = vmatprep.subr.mxu0 0.0
    %240 = vmatpush1.msra.mxu0 %v178
    %241 = vmatprep.subr.mxu0 0.0
    %242 = vmatpush1.msra.mxu0 %v179
    %243 = vmatprep.subr.mxu0 0.0
    %244 = vmatpush1.msra.mxu0 %v180
    %245 = vmatprep.subr.mxu0 0.0
    %246 = vmatpush1.msra.mxu0 %v181
    %247 = vmatprep.subr.mxu0 0.0
    %248 = vmatpush1.msra.mxu0 %v182
    %249 = vmatprep.subr.mxu0 0.0
    %250 = vmatpush1.msra.mxu0 %v183
    %251 = vmatprep.subr.mxu0 0.0
    %252 = vmatpush1.msra.mxu0 %v184
    %253 = vmatprep.subr.mxu0 0.0
    %254 = vmatpush1.msra.mxu0 %v185
    %255 = vmatprep.subr.mxu0 0.0
    %256 = vmatpush1.msra.mxu0 %v186
    %257 = vmatprep.subr.mxu0 0.0
    %258 = vmatpush1.msra.mxu0 %v187
    %259 = vmatprep.mubr.f32.mxu0 %v155
    %260 = vmatmul.mubr.f32.gmra.mrb[0].mxu0 %v154
    %v261 = vpop.f32.mrb[0].mxu0
    %v262 = vadd.f32 %v193, %v261
    %v263 = vpop.f32.mrb[0].mxu0
    %264 = vdwg.mxu0
    %v265 = vlaneseq
    %v266 = vand.u32 %v265, 127
    %vm267 = vcmp.lt.s32.totalorder %v266, 2
    %v268 = vsel %vm267, %v262, -1e+30
    %269 = vmax.xlane.f32.xlu0 %v268
    %v270 = vpop.xlane.xlu0 %269
    %v271 = vsub.f32 %v268, %v270
    %v272 = vmul.f32 %v271, 1.442695
    %v273 = vpow.pop %v272
    %274 = vadd.xlane.f32.xlu0 %v273
    %v275 = vpop.xlane.xlu0 %274
    %v276 = vrcp.pop %v275
    %v277 = vmul.f32 %v273, %v276
    %v278 = vsel %vm267, %v277, %v262
    %vm279 = vcmask 23552
    %280 = vst.msk [vmem:[%s5] sm:$0xff] %vm279, %v278
    // Predicated region
    $region26: #{agent_forward.1} parent=1 // pred_check
      _
    $region27: #{agent_forward.1} parent=1 // pred_check_branch
      %282 = sbr.rel (0) target = $region29
    $region28: #{agent_forward.1} parent=1 // pred_region
      _
    $region29: #{agent_forward.1} parent=1 // pred_fallthru
      _
    // Predicated region
    $region30: #{agent_forward.1} parent=1 // pred_check
      _
    $region31: #{agent_forward.1} parent=1 // pred_check_branch
      %284 = sbr.rel (0) target = $region33
    $region32: #{agent_forward.1} parent=1 // pred_region
      _
    $region33: #{agent_forward.1} parent=1 // pred_fallthru
      _
    %285 = vsyncpa [#allocation3], 1

</llo_original>
